<compile_context>
chip_gen: v6e
topology: v6e:2x2x1
jax: 0.10.0
libtpu: 0.0.40
codegen_flags: <defaults>
</compile_context>

<pallas_src>
import functools

import jax
import jax.numpy as jnp
from jax.experimental import pallas as pl
from jax.experimental.pallas import tpu as pltpu


# ---------------------------------------------------------------------------
# VMEM planning (generation aware: v7x = 64 MiB physical, v5e/v6e = 128 MiB)
# ---------------------------------------------------------------------------
def _vmem_plan():
    phys = 64 << 20                      # conservative default (v7x-sized)
    try:
        phys = int(pltpu.get_tpu_info().vmem_capacity_bytes)
    except Exception:
        pass
    if phys >= (96 << 20):               # v5e / v6e (128 MiB physical)
        budget = 28 << 20
    else:                                # v7x (64 MiB physical) or unknown
        budget = 24 << 20
    limit = budget + (8 << 20)           # headroom for weights / compiler scratch
    return budget, limit


def _largest_divisor_leq(n, cap):
    cap = max(1, min(int(n), int(cap)))
    for d in range(cap, 0, -1):
        if n % d == 0:
            return d
    return 1


def _pick_spatial_tile(C, HW, itemsize, block_cap_bytes):
    """Largest spatial tile T for a (bb>=1, C, T) block within block_cap_bytes.

    Prefers exact divisors of HW (no tail masking); otherwise returns a
    128-multiple and the caller uses a cdiv grid + in-kernel tail mask.
    Note: floors at one lane-width (128) even for pathologically large C.
    """
    row_bytes = max(1, C * itemsize)
    max_t = (block_cap_bytes // row_bytes) // 128 * 128
    if max_t < 128:
        max_t = 128
    if HW <= max_t:
        return HW                        # single full-extent block (any alignment)
    best = 0
    t = 128
    while t <= max_t:
        if HW % t == 0:
            best = t
        t += 128
    return best if best else max_t       # cdiv grid + tail mask


# ---------------------------------------------------------------------------
# Fused single-pass kernel: pool + excite MLP + scale (grid over batch only)
# ---------------------------------------------------------------------------
def fused_kernel(x_ref, w1_ref, b1_ref, w2_ref, b2_ref, o_ref, y_scr, *, inv_hw):
    # x_ref: (bb, C, HW); w1: (C, Ch); b1: (1, Ch); w2: (Ch, C); b2: (1, C)
    # y_scr: (2*bb, C) f32 scratch used to batch the two MLP evaluations.
    x = x_ref[...]
    xf = x.astype(jnp.float32)
    bb = x.shape[0]

    y_scr[0:bb, :] = jnp.sum(xf, axis=-1) * inv_hw        # avg pool  (bb, C)
    y_scr[bb:2 * bb, :] = jnp.max(xf, axis=-1)            # max pool  (bb, C)

    y = y_scr[...]                                        # (2*bb, C)
    h = jnp.maximum(
        jnp.dot(y, w1_ref[...], preferred_element_type=jnp.float32) + b1_ref[...],
        0.0)
    z = jnp.dot(h, w2_ref[...], preferred_element_type=jnp.float32) + b2_ref[...]
    gate = jax.nn.sigmoid(z[0:bb, :] + z[bb:2 * bb, :])   # (bb, C)

    o_ref[...] = (x * gate.astype(x.dtype)[:, :, None]).astype(o_ref.dtype)


# ---------------------------------------------------------------------------
# Two-pass streaming path: pass 1 = channel sum & max pooling
# ---------------------------------------------------------------------------
def pool_kernel(x_ref, sum_ref, max_ref, *, hw, tile, need_mask):
    # x_ref: (bb, C, T); sum_ref/max_ref: (bb, C, 1) resident accumulators.
    ti = pl.program_id(1)
    x = x_ref[...].astype(jnp.float32)
    if need_mask:
        lane = jax.lax.broadcasted_iota(jnp.int32, x.shape, 2)
        valid = (ti * tile + lane) < hw
        x_sum = jnp.where(valid, x, 0.0)
        x_max = jnp.where(valid, x, -jnp.inf)
    else:
        x_sum = x
        x_max = x
    part_sum = jnp.sum(x_sum, axis=-1, keepdims=True)
    part_max = jnp.max(x_max, axis=-1, keepdims=True)

    @pl.when(ti == 0)
    def _():
        sum_ref[...] = part_sum
        max_ref[...] = part_max

    @pl.when(ti > 0)
    def _():
        sum_ref[...] = sum_ref[...] + part_sum
        max_ref[...] = jnp.maximum(max_ref[...], part_max)


# ---------------------------------------------------------------------------
# Two-pass streaming path: pass 2 = streaming scale
# ---------------------------------------------------------------------------
def scale_kernel(x_ref, gate_ref, o_ref):
    # x_ref: (bb, C, T); gate_ref: (bb, C, 1) (channel on sublanes, no relayout)
    x = x_ref[...]
    g = gate_ref[...].astype(x.dtype)
    o_ref[...] = (x * g).astype(o_ref.dtype)


# ---------------------------------------------------------------------------
# Wrapper
# ---------------------------------------------------------------------------
def channel_gate(x_nchw, w1, b1, w2, b2, *, force_two_pass=False, _budget_bytes=None):
    """ChannelGate forward.

    x_nchw: (B, C, H, W).  PyTorch nn.Linear layout:
      w1: (C//r, C), b1: (C//r,), w2: (C, C//r), b2: (C,).
    """
    B, C, H, W = x_nchw.shape
    HW = H * W
    x3 = x_nchw.reshape(B, C, HW)
    itemsize = x3.dtype.itemsize
    inv_hw = 1.0 / float(HW)

    budget, vmem_limit = _vmem_plan()
    if _budget_bytes is not None:        # test hook to force the streaming path
        budget = int(_budget_bytes)
        vmem_limit = budget + (8 << 20)

    w1t = w1.T                           # (C, Ch)
    w2t = w2.T                           # (Ch, C)
    b1r = b1.reshape(1, -1)              # (1, Ch)
    b2r = b2.reshape(1, -1)              # (1, C)
    Ch = w1t.shape[1]

    per_sample = C * HW * itemsize

    # ---------------- fused single-pass path (activation fits VMEM) --------
    fused_block_cap = budget // 5        # x-in + out, each double-buffered, + slack
    if (not force_two_pass) and per_sample <= fused_block_cap:
        bb = _largest_divisor_leq(
            B, min(fused_block_cap // per_sample, max(1, B // 2)))
        out = pl.pallas_call(
            functools.partial(fused_kernel, inv_hw=inv_hw),
            out_shape=jax.ShapeDtypeStruct((B, C, HW), x3.dtype),
            grid_spec=pltpu.PrefetchScalarGridSpec(
                num_scalar_prefetch=0,
                grid=(B // bb,),
                in_specs=[
                    pl.BlockSpec((bb, C, HW), lambda bi: (bi, 0, 0)),
                    pl.BlockSpec((C, Ch), lambda bi: (0, 0)),
                    pl.BlockSpec((1, Ch), lambda bi: (0, 0)),
                    pl.BlockSpec((Ch, C), lambda bi: (0, 0)),
                    pl.BlockSpec((1, C), lambda bi: (0, 0)),
                ],
                out_specs=pl.BlockSpec((bb, C, HW), lambda bi: (bi, 0, 0)),
                scratch_shapes=[pltpu.VMEM((2 * bb, C), jnp.float32)],
            ),
            compiler_params=pltpu.CompilerParams(
                dimension_semantics=("parallel",),
                vmem_limit_bytes=vmem_limit),
        )(x3, w1t, b1r, w2t, b2r)
        return out.reshape(B, C, H, W)

    # ---------------- two-pass streaming path (large activations) ----------
    # Pass 1: only the input is double-buffered (outputs are (bb,C,1)).
    pool_block_cap = (budget // 5) * 2
    T1 = _pick_spatial_tile(C, HW, itemsize, pool_block_cap)
    bb1_cap = max(1, pool_block_cap // max(1, C * T1 * itemsize))
    bb1 = _largest_divisor_leq(B, min(bb1_cap, max(1, B // 2)))
    nt1 = pl.cdiv(HW, T1)
    need_mask1 = (HW % T1) != 0

    pooled_sum, pooled_max = pl.pallas_call(
        functools.partial(pool_kernel, hw=HW, tile=T1, need_mask=need_mask1),
        out_shape=(jax.ShapeDtypeStruct((B, C, 1), jnp.float32),
                   jax.ShapeDtypeStruct((B, C, 1), jnp.float32)),
        grid_spec=pltpu.PrefetchScalarGridSpec(
            num_scalar_prefetch=0,
            grid=(B // bb1, nt1),
            in_specs=[pl.BlockSpec((bb1, C, T1), lambda bi, ti: (bi, 0, ti))],
            out_specs=(pl.BlockSpec((bb1, C, 1), lambda bi, ti: (bi, 0, 0)),
                       pl.BlockSpec((bb1, C, 1), lambda bi, ti: (bi, 0, 0))),
        ),
        compiler_params=pltpu.CompilerParams(
            dimension_semantics=("parallel", "arbitrary"),
            vmem_limit_bytes=vmem_limit),
    )(x3)

    # Excite: tiny batched MLP in plain jnp (XLA fuses it; negligible FLOPs),
    # avg & max stacked so the weights are swept once.
    sum_bc = pooled_sum.reshape(B, C)
    max_bc = pooled_max.reshape(B, C)
    y = jnp.concatenate([sum_bc * inv_hw, max_bc], axis=0)        # (2B, C)
    h = jnp.maximum(y @ w1t + b1r, 0.0)
    z = h @ w2t + b2r
    gate3 = jax.nn.sigmoid(z[:B] + z[B:]).reshape(B, C, 1).astype(jnp.float32)

    # Pass 2: input + output both double-buffered.
    scale_block_cap = budget // 5
    T2 = _pick_spatial_tile(C, HW, itemsize, scale_block_cap)
    bb2_cap = max(1, scale_block_cap // max(1, C * T2 * itemsize))
    bb2 = _largest_divisor_leq(B, bb2_cap)
    nt2 = pl.cdiv(HW, T2)

    out = pl.pallas_call(
        scale_kernel,
        out_shape=jax.ShapeDtypeStruct((B, C, HW), x3.dtype),
        grid_spec=pltpu.PrefetchScalarGridSpec(
            num_scalar_prefetch=0,
            grid=(B // bb2, nt2),
            in_specs=[pl.BlockSpec((bb2, C, T2), lambda bi, ti: (bi, 0, ti)),
                      pl.BlockSpec((bb2, C, 1), lambda bi, ti: (bi, 0, 0))],
            out_specs=pl.BlockSpec((bb2, C, T2), lambda bi, ti: (bi, 0, ti)),
        ),
        compiler_params=pltpu.CompilerParams(
            dimension_semantics=("parallel", "parallel"),
            vmem_limit_bytes=vmem_limit),
    )(x3, gate3)
    return out.reshape(B, C, H, W)


# --------------------------------------------------------------- reference --
def channel_gate_ref(x, w1, b1, w2, b2):
    avg = jnp.mean(x, axis=(2, 3))
    mx = jnp.max(x, axis=(2, 3))

    def mlp(y):
        return jnp.maximum(y @ w1.T + b1, 0.0) @ w2.T + b2

    gate = jax.nn.sigmoid(mlp(avg) + mlp(mx))
    return x * gate[:, :, None, None]


if __name__ == "__main__":
    B, C, H, W = 2, 64, 16, 16
    reduction = 16
    Ch = C // reduction

    key = jax.random.PRNGKey(0)
    kx, k1, kb1, k2, kb2, kx2 = jax.random.split(key, 6)
    x = jax.random.normal(kx, (B, C, H, W), dtype=jnp.float32)
    # PyTorch Linear weight layout: (out_features, in_features), plus biases.
    w1 = jax.random.normal(k1, (Ch, C), dtype=jnp.float32) * 0.1
    b1 = jax.random.normal(kb1, (Ch,), dtype=jnp.float32) * 0.1
    w2 = jax.random.normal(k2, (C, Ch), dtype=jnp.float32) * 0.1
    b2 = jax.random.normal(kb2, (C,), dtype=jnp.float32) * 0.1

    # 1) Fused single-pass path (default at this shape).
    out = jax.block_until_ready(channel_gate(x, w1, b1, w2, b2))
    ref = jax.block_until_ready(channel_gate_ref(x, w1, b1, w2, b2))
    assert out.shape == (B, C, H, W)
    err = float(jnp.max(jnp.abs(out - ref)))
    assert jnp.allclose(out, ref, atol=1e-4, rtol=1e-4), f"fused mismatch {err}"

    # 2) Two-pass streaming path, forced with a tiny budget and an unaligned
    #    spatial extent so the cdiv-grid tail mask / partial blocks are tested.
    H2, W2 = 20, 20
    x2 = jax.random.normal(kx2, (B, C, H2, W2), dtype=jnp.float32)
    out2 = jax.block_until_ready(
        channel_gate(x2, w1, b1, w2, b2,
                     force_two_pass=True, _budget_bytes=192 * 1024))
    ref2 = jax.block_until_ready(channel_gate_ref(x2, w1, b1, w2, b2))
    err2 = float(jnp.max(jnp.abs(out2 - ref2)))
    assert jnp.allclose(out2, ref2, atol=1e-4, rtol=1e-4), f"streaming mismatch {err2}"

    print("KERNEL_OK")
</pallas_src>

<mosaic_0001>
module attributes {stable_mosaic.version = 11 : i64} {
  func.func @fused_kernel(%arg0: i32, %arg1: memref<1x64x256xf32, #tpu.memory_space<vmem>>, %arg2: memref<64x4xf32, #tpu.memory_space<vmem>>, %arg3: memref<1x4xf32, #tpu.memory_space<vmem>>, %arg4: memref<4x64xf32, #tpu.memory_space<vmem>>, %arg5: memref<1x64xf32, #tpu.memory_space<vmem>>, %arg6: memref<1x64x256xf32, #tpu.memory_space<vmem>>, %arg7: memref<2x64xf32, #tpu.memory_space<vmem>>) attributes {dimension_semantics = [#tpu.dimension_semantics<parallel>], iteration_bounds = array<i64: 2>, scalar_prefetch = 0 : i64, scratch_operands = 1 : i64, tpu.core_type = #tpu.core_type<tc>, window_params = [{transform_indices = @transform_0, window_bounds = array<i64: 1, 64, 256>}, {pipeline_mode = #tpu.pipeline_mode<synchronous>, transform_indices = @transform_1, window_bounds = array<i64: 64, 4>}, {pipeline_mode = #tpu.pipeline_mode<synchronous>, transform_indices = @transform_2, window_bounds = array<i64: 1, 4>}, {pipeline_mode = #tpu.pipeline_mode<synchronous>, transform_indices = @transform_3, window_bounds = array<i64: 4, 64>}, {pipeline_mode = #tpu.pipeline_mode<synchronous>, transform_indices = @transform_4, window_bounds = array<i64: 1, 64>}, {transform_indices = @transform_5, window_bounds = array<i64: 1, 64, 256>}]} {
    %c0 = arith.constant 0 : index
    %c0_0 = arith.constant 0 : index
    %c0_1 = arith.constant 0 : index
    %0 = vector.load %arg1[%c0, %c0_0, %c0_1] : memref<1x64x256xf32, #tpu.memory_space<vmem>>, vector<1x64x256xf32>
    %cst = arith.constant dense<0.000000e+00> : vector<1x64xf32>
    %1 = vector.multi_reduction <add>, %0, %cst [2] : vector<1x64x256xf32> to vector<1x64xf32>
    %cst_2 = arith.constant 3.906250e-03 : f32
    %2 = vector.broadcast %cst_2 : f32 to vector<1x64xf32>
    %3 = arith.mulf %1, %2 : vector<1x64xf32>
    %c0_3 = arith.constant 0 : index
    %c0_4 = arith.constant 0 : index
    %4 = vector.load %arg7[%c0_3, %c0_4] : memref<2x64xf32, #tpu.memory_space<vmem>>, vector<1x64xf32>
    tpu.vector_store %arg7[%c0_3, %c0_4], %3 {strides = array<i32>} : memref<2x64xf32, #tpu.memory_space<vmem>>, vector<1x64xf32>,
    %cst_5 = arith.constant dense<0xFF800000> : vector<1x64xf32>
    %5 = vector.multi_reduction <maximumf>, %0, %cst_5 [2] : vector<1x64x256xf32> to vector<1x64xf32>
    %c1 = arith.constant 1 : index
    %c0_6 = arith.constant 0 : index
    %6 = vector.load %arg7[%c1, %c0_6] : memref<2x64xf32, #tpu.memory_space<vmem>>, vector<1x64xf32>
    tpu.vector_store %arg7[%c1, %c0_6], %5 {strides = array<i32>} : memref<2x64xf32, #tpu.memory_space<vmem>>, vector<1x64xf32>,
    %c0_7 = arith.constant 0 : index
    %c0_8 = arith.constant 0 : index
    %7 = vector.load %arg7[%c0_7, %c0_8] : memref<2x64xf32, #tpu.memory_space<vmem>>, vector<2x64xf32>
    %c0_9 = arith.constant 0 : index
    %c0_10 = arith.constant 0 : index
    %8 = vector.load %arg2[%c0_9, %c0_10] : memref<64x4xf32, #tpu.memory_space<vmem>>, vector<64x4xf32>
    %cst_11 = arith.constant dense<0.000000e+00> : vector<2x4xf32>
    %9 = tpu.matmul %7, %8, %cst_11 {dimension_numbers = #tpu.dot_dimension_numbers<[1], [0], [0], [1], [0, 0, 1, 1], [], []>} : vector<2x64xf32>, vector<64x4xf32>, vector<2x4xf32> -> vector<2x4xf32>
    %c0_12 = arith.constant 0 : index
    %c0_13 = arith.constant 0 : index
    %10 = vector.load %arg3[%c0_12, %c0_13] : memref<1x4xf32, #tpu.memory_space<vmem>>, vector<1x4xf32>
    %11 = vector.broadcast %10 : vector<1x4xf32> to vector<2x4xf32>
    %12 = arith.addf %9, %11 : vector<2x4xf32>
    %cst_14 = arith.constant 0.000000e+00 : f32
    %13 = vector.broadcast %cst_14 : f32 to vector<2x4xf32>
    %14 = arith.maximumf %12, %13 : vector<2x4xf32>
    %c0_15 = arith.constant 0 : index
    %c0_16 = arith.constant 0 : index
    %15 = vector.load %arg4[%c0_15, %c0_16] : memref<4x64xf32, #tpu.memory_space<vmem>>, vector<4x64xf32>
    %cst_17 = arith.constant dense<0.000000e+00> : vector<2x64xf32>
    %16 = tpu.matmul %14, %15, %cst_17 {dimension_numbers = #tpu.dot_dimension_numbers<[1], [0], [0], [1], [0, 0, 1, 1], [], []>} : vector<2x4xf32>, vector<4x64xf32>, vector<2x64xf32> -> vector<2x64xf32>
    %c0_18 = arith.constant 0 : index
    %c0_19 = arith.constant 0 : index
    %17 = vector.load %arg5[%c0_18, %c0_19] : memref<1x64xf32, #tpu.memory_space<vmem>>, vector<1x64xf32>
    %18 = vector.broadcast %17 : vector<1x64xf32> to vector<2x64xf32>
    %19 = arith.addf %16, %18 : vector<2x64xf32>
    %20 = vector.extract_strided_slice %19 {offsets = [0, 0], sizes = [1, 64], strides = [1, 1]} : vector<2x64xf32> to vector<1x64xf32>
    %21 = vector.extract_strided_slice %19 {offsets = [1, 0], sizes = [1, 64], strides = [1, 1]} : vector<2x64xf32> to vector<1x64xf32>
    %22 = arith.addf %20, %21 : vector<1x64xf32>
    %23 = arith.negf %22 : vector<1x64xf32>
    %24 = math.exp %23 : vector<1x64xf32>
    %cst_20 = arith.constant 1.000000e+00 : f32
    %25 = vector.broadcast %cst_20 : f32 to vector<1x64xf32>
    %26 = arith.addf %25, %24 : vector<1x64xf32>
    %27 = arith.divf %25, %26 : vector<1x64xf32>
    %28 = vector.shape_cast %27 : vector<1x64xf32> to vector<1x64x1xf32>
    %29 = vector.broadcast %28 : vector<1x64x1xf32> to vector<1x64x256xf32>
    %30 = arith.mulf %0, %29 : vector<1x64x256xf32>
    %c0_21 = arith.constant 0 : index
    %c0_22 = arith.constant 0 : index
    %c0_23 = arith.constant 0 : index
    %31 = vector.load %arg6[%c0_21, %c0_22, %c0_23] : memref<1x64x256xf32, #tpu.memory_space<vmem>>, vector<1x64x256xf32>
    tpu.vector_store %arg6[%c0_21, %c0_22, %c0_23], %30 {strides = array<i32>} : memref<1x64x256xf32, #tpu.memory_space<vmem>>, vector<1x64x256xf32>,
    return
  }
  func.func @transform_0(%arg0: i32) -> (i32, i32, i32) {
    %c0_i32 = arith.constant 0 : i32
    %c0_i32_0 = arith.constant 0 : i32
    %c0_i32_1 = arith.constant 0 : i32
    return %arg0, %c0_i32, %c0_i32_0 : i32, i32, i32
  }
  func.func @transform_1(%arg0: i32) -> (i32, i32) {
    %c0_i32 = arith.constant 0 : i32
    %c0_i32_0 = arith.constant 0 : i32
    %c0_i32_1 = arith.constant 0 : i32
    return %c0_i32, %c0_i32_0 : i32, i32
  }
  func.func @transform_2(%arg0: i32) -> (i32, i32) {
    %c0_i32 = arith.constant 0 : i32
    %c0_i32_0 = arith.constant 0 : i32
    %c0_i32_1 = arith.constant 0 : i32
    return %c0_i32, %c0_i32_0 : i32, i32
  }
  func.func @transform_3(%arg0: i32) -> (i32, i32) {
    %c0_i32 = arith.constant 0 : i32
    %c0_i32_0 = arith.constant 0 : i32
    %c0_i32_1 = arith.constant 0 : i32
    return %c0_i32, %c0_i32_0 : i32, i32
  }
  func.func @transform_4(%arg0: i32) -> (i32, i32) {
    %c0_i32 = arith.constant 0 : i32
    %c0_i32_0 = arith.constant 0 : i32
    %c0_i32_1 = arith.constant 0 : i32
    return %c0_i32, %c0_i32_0 : i32, i32
  }
  func.func @transform_5(%arg0: i32) -> (i32, i32, i32) {
    %c0_i32 = arith.constant 0 : i32
    %c0_i32_0 = arith.constant 0 : i32
    %c0_i32_1 = arith.constant 0 : i32
    return %arg0, %c0_i32, %c0_i32_0 : i32, i32, i32
  }
}

</mosaic_0001>

<llo_original>
// kernel: tpu_custom_call.1
$region0: #{tpu_custom_call.1}
  #allocation0 [shape = 'u32[]', space=smem, size = 0x4, offset = 0x4, fixed_abs, tag = 'smem constant byte address 0x4 - core index']
  #allocation1 [shape = 'u32[144,128]{1,0:T(1,128)}', space=vmem, size = 0x12000, scoped, tag = 'internal scratch']
  #allocation2 [shape = 'f32[2,64]{1,0:T(2,128)}', space=vmem, size = 0x400, scoped, tag = 'scratch operand']
  %s0 = inlined_call_operand.hbm [shape: f32[2,64,256], index: 0, kind: input, shape index: {}]
  %s1 = inlined_call_operand.vmem [shape: f32[64,4], index: 1, kind: input, shape index: {}]
  %s2 = inlined_call_operand.vmem [shape: f32[1,4], index: 2, kind: input, shape index: {}]
  %s3 = inlined_call_operand.vmem [shape: f32[4,64], index: 3, kind: input, shape index: {}]
  %s4 = inlined_call_operand.vmem [shape: f32[1,64], index: 4, kind: input, shape index: {}]
  %s5 = inlined_call_operand.hbm [shape: f32[2,64,256], index: 5, kind: output, shape index: {}]
  %s6 = sld [smem:[#allocation0]]
  $region57: #{tpu_custom_call.1} parent=0
    _
  %s8 = ssub.s32 1, %s6
  %s9 = scalar_select 0, %s8, %s6
  $region1: #{tpu_custom_call.1} parent=0
    #allocation3 [shape = 'u8[131072]{0}', space=vmem, size = 0x20000, scoped, tag = 'input window, operand 0']
    #allocation4 [shape = 's32[2]{0}', space=sflag, size = 0x8, scoped, tag = 'scoped memory for tpu_custom_call.1']
    #allocation5 [shape = 's32[2]{0}', space=sflag, size = 0x8, scoped, tag = 'scoped memory for tpu_custom_call.1']
    #allocation6 [shape = 'u8[131072]{0}', space=vmem, size = 0x20000, scoped, tag = 'output window, operand 0']
    %10 = vsyncpa [#allocation4], 0
    %s11 = scalar_lea.sflag [#allocation4], 1
    %12 = vsyncpa %s11, 0
    %13 = vsyncpa [#allocation5], 0
    %s14 = scalar_lea.sflag [#allocation5], 1
    %15 = vsyncpa %s14, 0
    loop: start=0, step=1, limit=4
    $region2: #{tpu_custom_call.1} parent=1 // loop_pre_header
      _
    $region3: #{tpu_custom_call.1} parent=1 // loop_header
      %s17 = sphi 0, %s21
      %p18 = scmp.ge.s32.totalorder %s17, 4
      %s27 = sphi 0, %s29
      %s30 = sphi 0, %s27
      %s31 = sphi 0, %s30
      %s47 = sphi 0, %s31
      %s51 = sphi 0, %s51
      %s53 = sphi 0, %s51
      %s54 = sphi 0, %s53
      %s68 = sphi 0, %s54
      %s72 = sphi 0, %s72
      %s74 = sphi 0, %s72
      %s75 = sphi 0, %s74
      %s89 = sphi 0, %s75
      %s93 = sphi 0, %s93
      %s95 = sphi 0, %s93
      %s96 = sphi 0, %s95
      %s110 = sphi 0, %s96
      %s114 = sphi 0, %s114
      %s116 = sphi 0, %s114
      %s117 = sphi 0, %s116
      %s131 = sphi 0, %s117
      %s137 = sphi 0, %s139
      %s140 = sphi 0, %s137
      %s141 = sphi 0, %s140
      %s157 = sphi 0, %s141
    $region4: #{tpu_custom_call.1} parent=1 // loop_header_branch
      %20 = sbr.rel (%p18) target = $region8
    $region5: #{tpu_custom_call.1} parent=1 // loop_body
      %s22 = ssub.s32 %s17, 1
      %s23 = ssub.s32 %s17, 2
      %s24 = sadd.s32 %s17, 1
      %s25 = ssub.s32 %s17, %s24
      %p26 = scmp.eq.s32.totalorder %s25, 0
      %s28 = sadd.s32 %s27, 1
      %s29 = scalar_select %p26, %s27, %s28
      %p32 = pneg %p26
      %p33 = scmp.eq.s32.totalorder %s17, 1
      %p34 = por %p32, %p33
      %p35 = scmp.ne.s32.totalorder %s27, %s30
      %p36 = scmp.eq.s32.totalorder %s17, 0
      %p37 = por %p35, %p36
      %p38 = scmp.ne.s32.totalorder %s27, %s30
      %p39 = scmp.eq.s32.totalorder %s22, 1
      %p40 = por %p38, %p39
      %p41 = scmp.ne.s32.totalorder %s30, %s31
      %p42 = scmp.eq.s32.totalorder %s22, 0
      %p43 = por %p41, %p42
      %p44 = scmp.ne.s32.totalorder %s30, %s31
      %p45 = scmp.eq.s32.totalorder %s23, 1
      %p46 = por %p44, %p45
      %p48 = scmp.ne.s32.totalorder %s31, %s47
      %p49 = scmp.eq.s32.totalorder %s23, 0
      %p50 = por %p48, %p49
      %s52 = sadd.s32 %s51, 1
      %p55 = scmp.eq.s32.totalorder %s17, 1
      %p56 = scmp.ne.s32.totalorder %s51, %s53
      %p57 = scmp.eq.s32.totalorder %s17, 0
      %p58 = por %p56, %p57
      %p59 = scmp.ne.s32.totalorder %s51, %s53
      %p60 = scmp.eq.s32.totalorder %s22, 1
      %p61 = por %p59, %p60
      %p62 = scmp.ne.s32.totalorder %s53, %s54
      %p63 = scmp.eq.s32.totalorder %s22, 0
      %p64 = por %p62, %p63
      %p65 = scmp.ne.s32.totalorder %s53, %s54
      %p66 = scmp.eq.s32.totalorder %s23, 1
      %p67 = por %p65, %p66
      %p69 = scmp.ne.s32.totalorder %s54, %s68
      %p70 = scmp.eq.s32.totalorder %s23, 0
      %p71 = por %p69, %p70
      %s73 = sadd.s32 %s72, 1
      %p76 = scmp.eq.s32.totalorder %s17, 1
      %p77 = scmp.ne.s32.totalorder %s72, %s74
      %p78 = scmp.eq.s32.totalorder %s17, 0
      %p79 = por %p77, %p78
      %p80 = scmp.ne.s32.totalorder %s72, %s74
      %p81 = scmp.eq.s32.totalorder %s22, 1
      %p82 = por %p80, %p81
      %p83 = scmp.ne.s32.totalorder %s74, %s75
      %p84 = scmp.eq.s32.totalorder %s22, 0
      %p85 = por %p83, %p84
      %p86 = scmp.ne.s32.totalorder %s74, %s75
      %p87 = scmp.eq.s32.totalorder %s23, 1
      %p88 = por %p86, %p87
      %p90 = scmp.ne.s32.totalorder %s75, %s89
      %p91 = scmp.eq.s32.totalorder %s23, 0
      %p92 = por %p90, %p91
      %s94 = sadd.s32 %s93, 1
      %p97 = scmp.eq.s32.totalorder %s17, 1
      %p98 = scmp.ne.s32.totalorder %s93, %s95
      %p99 = scmp.eq.s32.totalorder %s17, 0
      %p100 = por %p98, %p99
      %p101 = scmp.ne.s32.totalorder %s93, %s95
      %p102 = scmp.eq.s32.totalorder %s22, 1
      %p103 = por %p101, %p102
      %p104 = scmp.ne.s32.totalorder %s95, %s96
      %p105 = scmp.eq.s32.totalorder %s22, 0
      %p106 = por %p104, %p105
      %p107 = scmp.ne.s32.totalorder %s95, %s96
      %p108 = scmp.eq.s32.totalorder %s23, 1
      %p109 = por %p107, %p108
      %p111 = scmp.ne.s32.totalorder %s96, %s110
      %p112 = scmp.eq.s32.totalorder %s23, 0
      %p113 = por %p111, %p112
      %s115 = sadd.s32 %s114, 1
      %p118 = scmp.eq.s32.totalorder %s17, 1
      %p119 = scmp.ne.s32.totalorder %s114, %s116
      %p120 = scmp.eq.s32.totalorder %s17, 0
      %p121 = por %p119, %p120
      %p122 = scmp.ne.s32.totalorder %s114, %s116
      %p123 = scmp.eq.s32.totalorder %s22, 1
      %p124 = por %p122, %p123
      %p125 = scmp.ne.s32.totalorder %s116, %s117
      %p126 = scmp.eq.s32.totalorder %s22, 0
      %p127 = por %p125, %p126
      %p128 = scmp.ne.s32.totalorder %s116, %s117
      %p129 = scmp.eq.s32.totalorder %s23, 1
      %p130 = por %p128, %p129
      %p132 = scmp.ne.s32.totalorder %s117, %s131
      %p133 = scmp.eq.s32.totalorder %s23, 0
      %p134 = por %p132, %p133
      %s135 = ssub.s32 %s17, %s24
      %p136 = scmp.eq.s32.totalorder %s135, 0
      %s138 = sadd.s32 %s137, 1
      %s139 = scalar_select %p136, %s137, %s138
      %p142 = pneg %p136
      %p143 = scmp.eq.s32.totalorder %s17, 1
      %p144 = por %p142, %p143
      %p145 = scmp.ne.s32.totalorder %s137, %s140
      %p146 = scmp.eq.s32.totalorder %s17, 0
      %p147 = por %p145, %p146
      %p148 = scmp.ne.s32.totalorder %s137, %s140
      %p149 = scmp.eq.s32.totalorder %s22, 1
      %p150 = por %p148, %p149
      %p151 = scmp.ne.s32.totalorder %s140, %s141
      %p152 = scmp.eq.s32.totalorder %s22, 0
      %p153 = por %p151, %p152
      %p154 = scmp.ne.s32.totalorder %s140, %s141
      %p155 = scmp.eq.s32.totalorder %s23, 1
      %p156 = por %p154, %p155
      %p158 = scmp.ne.s32.totalorder %s141, %s157
      %p159 = scmp.eq.s32.totalorder %s23, 0
      %p160 = por %p158, %p159
      %p161 = scmp.le.s32.totalorder 1, %s17
      %p162 = scmp.lt.s32.totalorder %s17, 3
      %p163 = pnand %p161, %p162
      %p164 = pneg %p163
      // Predicated region
      $region9: #{tpu_custom_call.1} parent=5 // pred_check
        _
      $region10: #{tpu_custom_call.1} parent=5 // pred_check_branch
        %166 = sbr.rel (%p163) target = $region12
      $region11: #{tpu_custom_call.1} parent=5 // pred_region
        %s167 = ssub.s32 %s17, 1
        // Predicated region
        $region13: #{tpu_custom_call.1} parent=11 // pred_check
          %p168 = pneg %p64
        $region14: #{tpu_custom_call.1} parent=11 // pred_check_branch
          %170 = sbr.rel (%p168) target = $region16
        $region15: #{tpu_custom_call.1} parent=11 // pred_region
          _
        $region16: #{tpu_custom_call.1} parent=11 // pred_fallthru
          _
        // Predicated region
        $region17: #{tpu_custom_call.1} parent=11 // pred_check
          %p171 = pneg %p85
        $region18: #{tpu_custom_call.1} parent=11 // pred_check_branch
          %173 = sbr.rel (%p171) target = $region20
        $region19: #{tpu_custom_call.1} parent=11 // pred_region
          _
        $region20: #{tpu_custom_call.1} parent=11 // pred_fallthru
          _
        // Predicated region
        $region21: #{tpu_custom_call.1} parent=11 // pred_check
          %p174 = pneg %p106
        $region22: #{tpu_custom_call.1} parent=11 // pred_check_branch
          %176 = sbr.rel (%p174) target = $region24
        $region23: #{tpu_custom_call.1} parent=11 // pred_region
          _
        $region24: #{tpu_custom_call.1} parent=11 // pred_fallthru
          _
        // Predicated region
        $region25: #{tpu_custom_call.1} parent=11 // pred_check
          %p177 = pneg %p127
        $region26: #{tpu_custom_call.1} parent=11 // pred_check_branch
          %179 = sbr.rel (%p177) target = $region28
        $region27: #{tpu_custom_call.1} parent=11 // pred_region
          _
        $region28: #{tpu_custom_call.1} parent=11 // pred_fallthru
          _
      $region12: #{tpu_custom_call.1} parent=5 // pred_fallthru
        _
      %p180 = scmp.lt.s32.totalorder %s17, 2
      // Predicated region
      $region29: #{tpu_custom_call.1} parent=5 // pred_check
        %p181 = pneg %p180
      $region30: #{tpu_custom_call.1} parent=5 // pred_check_branch
        %183 = sbr.rel (%p181) target = $region32
      $region31: #{tpu_custom_call.1} parent=5 // pred_region
        // Predicated region
        $region33: #{tpu_custom_call.1} parent=31 // pred_check
          %p184 = pneg %p37
        $region34: #{tpu_custom_call.1} parent=31 // pred_check_branch
          %186 = sbr.rel (%p184) target = $region36
        $region35: #{tpu_custom_call.1} parent=31 // pred_region
          %s187 = sand.u32 %s27, 1
          %s188 = scalar_lea.sflag [#allocation4], %s187
          %s189 = sand.u32 %s27, 1
          %s190 = smul.addr %s189, 128
          %s191 = scalar_lea.vmem [#allocation3], %s190
          %s193 = ssub.s32 2048, 2048
          %194 = vsyncadd %s188, %s193
          %s195 = smul.addr %s17, 16
          %s196 = smul.addr %s195, 128
          %s197 = scalar_lea.hbm %s0, %s196
          %s198 = sshll.u32 %s191, 4
          %s199 = int_to_ptr.vmem [resolvable:$true] %s198
          %204 = dma.hbm_to_vmem [thread:$0]  %s197, 2048, %s199, %s188, 256, 256, 16
        $region36: #{tpu_custom_call.1} parent=31 // pred_fallthru
          _
      $region32: #{tpu_custom_call.1} parent=5 // pred_fallthru
        _
      %p205 = scmp.le.s32.totalorder 1, %s17
      %p206 = scmp.lt.s32.totalorder %s17, 3
      %p207 = pnand %p205, %p206
      %p208 = pneg %p207
      // Predicated region
      $region37: #{tpu_custom_call.1} parent=5 // pred_check
        _
      $region38: #{tpu_custom_call.1} parent=5 // pred_check_branch
        %210 = sbr.rel (%p207) target = $region40
      $region39: #{tpu_custom_call.1} parent=5 // pred_region
        %s211 = ssub.s32 %s17, 1
        %s212 = sand.u32 %s30, 1
        %s213 = scalar_lea.sflag [#allocation4], %s212
        %s214 = sand.u32 %s30, 1
        %s215 = smul.addr %s214, 128
        %s216 = scalar_lea.vmem [#allocation3], %s215
        // Predicated region
        $region41: #{tpu_custom_call.1} parent=39 // pred_check
          %p217 = pneg %p43
        $region42: #{tpu_custom_call.1} parent=39 // pred_check_branch
          %219 = sbr.rel (%p217) target = $region44
        $region43: #{tpu_custom_call.1} parent=39 // pred_region
          %220 = dma.done %s213, 2048
        $region44: #{tpu_custom_call.1} parent=39 // pred_fallthru
          _
        %s221 = sand.u32 %s30, 1
        %s222 = scalar_lea.sflag [#allocation4], %s221
        %s223 = sand.u32 %s30, 1
        %s224 = smul.addr %s223, 128
        %s225 = scalar_lea.vmem [#allocation3], %s224
        %p226 = pneg %p43
        %p227 = pneg %p40
        %p228 = pneg %p64
        %p229 = pneg %p61
        %p230 = pneg %p85
        %p231 = pneg %p82
        %p232 = pneg %p106
        %p233 = pneg %p103
        %p234 = pneg %p127
        %p235 = pneg %p124
        %p236 = pneg %p153
        %p237 = pneg %p150
        %s238 = sand.u32 %s140, 1
        %s239 = scalar_lea.sflag [#allocation5], %s238
        %s240 = sand.u32 %s140, 1
        %s241 = smul.addr %s240, 128
        %s242 = scalar_lea.vmem [#allocation6], %s241
        %v243 = vld [vmem:[%s216] sm:$0xff]
        %v244 = vld [vmem:[%s216 + $0x8] sm:$0xff]
        %v245 = vld [vmem:[%s216 + $0x10] sm:$0xff]
        %v246 = vld [vmem:[%s216 + $0x18] sm:$0xff]
        %v247 = vld [vmem:[%s216 + $0x20] sm:$0xff]
        %v248 = vld [vmem:[%s216 + $0x28] sm:$0xff]
        %v249 = vld [vmem:[%s216 + $0x30] sm:$0xff]
        %v250 = vld [vmem:[%s216 + $0x38] sm:$0xff]
        %v251 = vld [vmem:[%s216 + $0x40] sm:$0xff]
        %v252 = vld [vmem:[%s216 + $0x48] sm:$0xff]
        %v253 = vld [vmem:[%s216 + $0x50] sm:$0xff]
        %v254 = vld [vmem:[%s216 + $0x58] sm:$0xff]
        %v255 = vld [vmem:[%s216 + $0x60] sm:$0xff]
        %v256 = vld [vmem:[%s216 + $0x68] sm:$0xff]
        %v257 = vld [vmem:[%s216 + $0x70] sm:$0xff]
        %v258 = vld [vmem:[%s216 + $0x78] sm:$0xff]
        %v259 = vadd.f32 %v243, %v244
        %260 = vadd.xlane.f32.xlu0 %v259
        %v261 = vpop.xlane.xlu0 %260
        %v262 = vadd.f32 %v245, %v246
        %263 = vadd.xlane.f32.xlu0 %v262
        %v264 = vpop.xlane.xlu0 %263
        %v265 = vadd.f32 %v247, %v248
        %266 = vadd.xlane.f32.xlu0 %v265
        %v267 = vpop.xlane.xlu0 %266
        %v268 = vadd.f32 %v249, %v250
        %269 = vadd.xlane.f32.xlu0 %v268
        %v270 = vpop.xlane.xlu0 %269
        %v271 = vadd.f32 %v251, %v252
        %272 = vadd.xlane.f32.xlu0 %v271
        %v273 = vpop.xlane.xlu0 %272
        %v274 = vadd.f32 %v253, %v254
        %275 = vadd.xlane.f32.xlu0 %v274
        %v276 = vpop.xlane.xlu0 %275
        %v277 = vadd.f32 %v255, %v256
        %278 = vadd.xlane.f32.xlu0 %v277
        %v279 = vpop.xlane.xlu0 %278
        %v280 = vadd.f32 %v257, %v258
        %281 = vadd.xlane.f32.xlu0 %v280
        %v282 = vpop.xlane.xlu0 %281
        %v283 = vmul.f32 %v261, 0.00390625
        %v284 = vmul.f32 %v264, 0.00390625
        %v285 = vmul.f32 %v267, 0.00390625
        %v286 = vmul.f32 %v270, 0.00390625
        %v287 = vmul.f32 %v273, 0.00390625
        %v288 = vmul.f32 %v276, 0.00390625
        %v289 = vmul.f32 %v279, 0.00390625
        %v290 = vmul.f32 %v282, 0.00390625
        %v299 = vlaneseq
        %v300 = vand.u32 %v299, 127
        %v301 = vlaneseq
        %v302 = vshrl.u32 %v301, 7
        %v303 = vsub.s32 %v300, %v302
        %v304 = vrot.slane %v283, %v303
        %v305 = vadd.s32 %v300, 4294967288
        %v306 = vlaneseq
        %v307 = vshrl.u32 %v306, 7
        %v308 = vsub.s32 %v305, %v307
        %v309 = vrot.slane %v284, %v308
        %vm310 = vcmask 130112
        %v311 = vsel %vm310, %v309, %v304
        %v312 = vadd.s32 %v300, 4294967280
        %v313 = vlaneseq
        %v314 = vshrl.u32 %v313, 7
        %v315 = vsub.s32 %v312, %v314
        %v316 = vrot.slane %v285, %v315
        %vm317 = vcmask 195712
        %v318 = vsel %vm317, %v316, %v311
        %v319 = vadd.s32 %v300, 4294967272
        %v320 = vlaneseq
        %v321 = vshrl.u32 %v320, 7
        %v322 = vsub.s32 %v319, %v321
        %v323 = vrot.slane %v286, %v322
        %vm324 = vcmask 261312
        %v325 = vsel %vm324, %v323, %v318
        %v326 = vadd.s32 %v300, 4294967264
        %v327 = vlaneseq
        %v328 = vshrl.u32 %v327, 7
        %v329 = vsub.s32 %v326, %v328
        %v330 = vrot.slane %v287, %v329
        %vm331 = vcmask 326912
        %v332 = vsel %vm331, %v330, %v325
        %v333 = vadd.s32 %v300, 4294967256
        %v334 = vlaneseq
        %v335 = vshrl.u32 %v334, 7
        %v336 = vsub.s32 %v333, %v335
        %v337 = vrot.slane %v288, %v336
        %vm338 = vcmask 392512
        %v339 = vsel %vm338, %v337, %v332
        %v340 = vadd.s32 %v300, 4294967248
        %v341 = vlaneseq
        %v342 = vshrl.u32 %v341, 7
        %v343 = vsub.s32 %v340, %v342
        %v344 = vrot.slane %v289, %v343
        %vm345 = vcmask 458112
        %v346 = vsel %vm345, %v344, %v339
        %v347 = vadd.s32 %v300, 4294967240
        %v348 = vlaneseq
        %v349 = vshrl.u32 %v348, 7
        %v350 = vsub.s32 %v347, %v349
        %v351 = vrot.slane %v290, %v350
        %vm352 = vcmask 523712
        %v353 = vsel %vm352, %v351, %v346
        %vm355 = vcmask 516096
        %356 = vst.msk [vmem:[#allocation2] sm:$0x1] %vm355, %v353
        %v357 = vmax.f32 %v243, %v244
        %358 = vmax.xlane.f32.xlu0 %v357
        %v359 = vpop.xlane.xlu0 %358
        %v360 = vmax.f32 %v245, %v246
        %361 = vmax.xlane.f32.xlu0 %v360
        %v362 = vpop.xlane.xlu0 %361
        %v363 = vmax.f32 %v247, %v248
        %364 = vmax.xlane.f32.xlu0 %v363
        %v365 = vpop.xlane.xlu0 %364
        %v366 = vmax.f32 %v249, %v250
        %367 = vmax.xlane.f32.xlu0 %v366
        %v368 = vpop.xlane.xlu0 %367
        %v369 = vmax.f32 %v251, %v252
        %370 = vmax.xlane.f32.xlu0 %v369
        %v371 = vpop.xlane.xlu0 %370
        %v372 = vmax.f32 %v253, %v254
        %373 = vmax.xlane.f32.xlu0 %v372
        %v374 = vpop.xlane.xlu0 %373
        %v375 = vmax.f32 %v255, %v256
        %376 = vmax.xlane.f32.xlu0 %v375
        %v377 = vpop.xlane.xlu0 %376
        %v378 = vmax.f32 %v257, %v258
        %379 = vmax.xlane.f32.xlu0 %v378
        %v380 = vpop.xlane.xlu0 %379
        %v389 = vlaneseq
        %v390 = vshrl.u32 %v389, 7
        %v391 = vsub.s32 %v300, %v390
        %v392 = vrot.slane %v359, %v391
        %v393 = vlaneseq
        %v394 = vshrl.u32 %v393, 7
        %v395 = vsub.s32 %v305, %v394
        %v396 = vrot.slane %v362, %v395
        %v397 = vsel %vm310, %v396, %v392
        %v398 = vlaneseq
        %v399 = vshrl.u32 %v398, 7
        %v400 = vsub.s32 %v312, %v399
        %v401 = vrot.slane %v365, %v400
        %v402 = vsel %vm317, %v401, %v397
        %v403 = vlaneseq
        %v404 = vshrl.u32 %v403, 7
        %v405 = vsub.s32 %v319, %v404
        %v406 = vrot.slane %v368, %v405
        %v407 = vsel %vm324, %v406, %v402
        %v408 = vlaneseq
        %v409 = vshrl.u32 %v408, 7
        %v410 = vsub.s32 %v326, %v409
        %v411 = vrot.slane %v371, %v410
        %v412 = vsel %vm331, %v411, %v407
        %v413 = vlaneseq
        %v414 = vshrl.u32 %v413, 7
        %v415 = vsub.s32 %v333, %v414
        %v416 = vrot.slane %v374, %v415
        %v417 = vsel %vm338, %v416, %v412
        %v418 = vlaneseq
        %v419 = vshrl.u32 %v418, 7
        %v420 = vsub.s32 %v340, %v419
        %v421 = vrot.slane %v377, %v420
        %v422 = vsel %vm345, %v421, %v417
        %v423 = vlaneseq
        %v424 = vshrl.u32 %v423, 7
        %v425 = vsub.s32 %v347, %v424
        %v426 = vrot.slane %v380, %v425
        %v427 = vsel %vm352, %v426, %v422
        %429 = vst.msk [vmem:[#allocation2 + $0x1] sm:$0x1] %vm355, %v427
        %v430 = vld [vmem:[#allocation2] sm:$0x3]
        %v431 = vld [vmem:[%s1] sm:$0xff]
        %v432 = vld [vmem:[%s1 + $0x8] sm:$0xff]
        %v433 = vld [vmem:[%s1 + $0x10] sm:$0xff]
        %v434 = vld [vmem:[%s1 + $0x18] sm:$0xff]
        %v435 = vld [vmem:[%s1 + $0x20] sm:$0xff]
        %v436 = vld [vmem:[%s1 + $0x28] sm:$0xff]
        %v437 = vld [vmem:[%s1 + $0x30] sm:$0xff]
        %v438 = vld [vmem:[%s1 + $0x38] sm:$0xff]
        %v439 = vld [vmem:[%s2] sm:$0x1]
        %v441 = vlaneseq
        %v442 = vshrl.u32 %v441, 7
        %v443 = vsub.s32 0, %v442
        %v444 = vrot.slane %v439, %v443
        %vm446 = vcmask 523264
        %v448 = vsel %vm446, %v430, 0
        %450 = vmatprep.subr.mxu0 0.0
        %451 = vmatpush1.msra.mxu0 0.0
        %452 = vmatprep.subr.mxu0 0.0
        %453 = vmatpush1.msra.mxu0 0.0
        %454 = vmatprep.subr.mxu0 0.0
        %455 = vmatpush1.msra.mxu0 0.0
        %456 = vmatprep.subr.mxu0 0.0
        %457 = vmatpush1.msra.mxu0 0.0
        %458 = vmatprep.subr.mxu0 0.0
        %459 = vmatpush1.msra.mxu0 0.0
        %460 = vmatprep.subr.mxu0 0.0
        %461 = vmatpush1.msra.mxu0 0.0
        %462 = vmatprep.subr.mxu0 0.0
        %463 = vmatpush1.msra.mxu0 0.0
        %464 = vmatprep.subr.mxu0 0.0
        %465 = vmatpush1.msra.mxu0 0.0
        %466 = vmatprep.subr.mxu0 0.0
        %467 = vmatpush1.msra.mxu0 %v438
        %468 = vmatprep.subr.mxu0 0.0
        %469 = vmatpush1.msra.mxu0 %v437
        %470 = vmatprep.subr.mxu0 0.0
        %471 = vmatpush1.msra.mxu0 %v436
        %472 = vmatprep.subr.mxu0 0.0
        %473 = vmatpush1.msra.mxu0 %v435
        %474 = vmatprep.subr.mxu0 0.0
        %475 = vmatpush1.msra.mxu0 %v434
        %476 = vmatprep.subr.mxu0 0.0
        %477 = vmatpush1.msra.mxu0 %v433
        %478 = vmatprep.subr.mxu0 0.0
        %479 = vmatpush1.msra.mxu0 %v432
        %480 = vmatprep.subr.mxu0 0.0
        %481 = vmatpush1.msra.mxu0 %v431
        %482 = vmatprep.subr.mxu0 0.0
        %483 = vmatpush2.msra.mxu0 0.0
        %484 = vmatprep.subr.mxu0 0.0
        %485 = vmatpush2.msra.mxu0 0.0
        %486 = vmatprep.subr.mxu0 0.0
        %487 = vmatpush2.msra.mxu0 0.0
        %488 = vmatprep.subr.mxu0 0.0
        %489 = vmatpush2.msra.mxu0 0.0
        %490 = vmatprep.subr.mxu0 0.0
        %491 = vmatpush2.msra.mxu0 0.0
        %492 = vmatprep.subr.mxu0 0.0
        %493 = vmatpush2.msra.mxu0 0.0
        %494 = vmatprep.subr.mxu0 0.0
        %495 = vmatpush2.msra.mxu0 0.0
        %496 = vmatprep.subr.mxu0 0.0
        %497 = vmatpush2.msra.mxu0 0.0
        %498 = vmatprep.subr.mxu0 0.0
        %499 = vmatpush2.msra.mxu0 0.0
        %500 = vmatprep.subr.mxu0 0.0
        %501 = vmatpush2.msra.mxu0 0.0
        %502 = vmatprep.subr.mxu0 0.0
        %503 = vmatpush2.msra.mxu0 0.0
        %504 = vmatprep.subr.mxu0 0.0
        %505 = vmatpush2.msra.mxu0 0.0
        %506 = vmatprep.subr.mxu0 0.0
        %507 = vmatpush2.msra.mxu0 0.0
        %508 = vmatprep.subr.mxu0 0.0
        %509 = vmatpush2.msra.mxu0 0.0
        %510 = vmatprep.subr.mxu0 0.0
        %511 = vmatpush2.msra.mxu0 0.0
        %512 = vmatprep.subr.mxu0 0.0
        %513 = vmatpush2.msra.mxu0 0.0
        %514 = vmatprep.mubr.f32.mxu0 0.0
        %515 = vmatmul.mubr.f32.gmra.mxu0 %v448
        %v516 = vpop.f32.mrf.mxu0
        %v517 = vadd.f32 %v444, %v516
        %v518 = vpop.f32.mrf.mxu0
        %519 = vdwg.mxu0
        %v520 = vmax.f32 %v517, 0.0
        %v521 = vld [vmem:[%s3] sm:$0xf]
        %v522 = vld [vmem:[%s4] sm:$0x1]
        %v524 = vlaneseq
        %v525 = vshrl.u32 %v524, 7
        %v526 = vsub.s32 0, %v525
        %v527 = vrot.slane %v522, %v526
        %vm529 = vcmask 31744
        %v531 = vsel %vm529, %v520, 0
        %vm533 = vcmask 1043456
        %v535 = vsel %vm533, %v521, 0
        %537 = vmatprep.subr.mxu0 0.0
        %538 = vmatpush1.msra.mxu0 0.0
        %539 = vmatprep.subr.mxu0 0.0
        %540 = vmatpush1.msra.mxu0 0.0
        %541 = vmatprep.subr.mxu0 0.0
        %542 = vmatpush1.msra.mxu0 0.0
        %543 = vmatprep.subr.mxu0 0.0
        %544 = vmatpush1.msra.mxu0 0.0
        %545 = vmatprep.subr.mxu0 0.0
        %546 = vmatpush1.msra.mxu0 0.0
        %547 = vmatprep.subr.mxu0 0.0
        %548 = vmatpush1.msra.mxu0 0.0
        %549 = vmatprep.subr.mxu0 0.0
        %550 = vmatpush1.msra.mxu0 0.0
        %551 = vmatprep.subr.mxu0 0.0
        %552 = vmatpush1.msra.mxu0 0.0
        %553 = vmatprep.subr.mxu0 0.0
        %554 = vmatpush1.msra.mxu0 0.0
        %555 = vmatprep.subr.mxu0 0.0
        %556 = vmatpush1.msra.mxu0 0.0
        %557 = vmatprep.subr.mxu0 0.0
        %558 = vmatpush1.msra.mxu0 0.0
        %559 = vmatprep.subr.mxu0 0.0
        %560 = vmatpush1.msra.mxu0 0.0
        %561 = vmatprep.subr.mxu0 0.0
        %562 = vmatpush1.msra.mxu0 0.0
        %563 = vmatprep.subr.mxu0 0.0
        %564 = vmatpush1.msra.mxu0 0.0
        %565 = vmatprep.subr.mxu0 0.0
        %566 = vmatpush1.msra.mxu0 0.0
        %567 = vmatprep.subr.mxu0 0.0
        %568 = vmatpush1.msra.mxu0 %v535
        %569 = vmatprep.subr.mxu0 0.0
        %570 = vmatpush2.msra.mxu0 0.0
        %571 = vmatprep.subr.mxu0 0.0
        %572 = vmatpush2.msra.mxu0 0.0
        %573 = vmatprep.subr.mxu0 0.0
        %574 = vmatpush2.msra.mxu0 0.0
        %575 = vmatprep.subr.mxu0 0.0
        %576 = vmatpush2.msra.mxu0 0.0
        %577 = vmatprep.subr.mxu0 0.0
        %578 = vmatpush2.msra.mxu0 0.0
        %579 = vmatprep.subr.mxu0 0.0
        %580 = vmatpush2.msra.mxu0 0.0
        %581 = vmatprep.subr.mxu0 0.0
        %582 = vmatpush2.msra.mxu0 0.0
        %583 = vmatprep.subr.mxu0 0.0
        %584 = vmatpush2.msra.mxu0 0.0
        %585 = vmatprep.subr.mxu0 0.0
        %586 = vmatpush2.msra.mxu0 0.0
        %587 = vmatprep.subr.mxu0 0.0
        %588 = vmatpush2.msra.mxu0 0.0
        %589 = vmatprep.subr.mxu0 0.0
        %590 = vmatpush2.msra.mxu0 0.0
        %591 = vmatprep.subr.mxu0 0.0
        %592 = vmatpush2.msra.mxu0 0.0
        %593 = vmatprep.subr.mxu0 0.0
        %594 = vmatpush2.msra.mxu0 0.0
        %595 = vmatprep.subr.mxu0 0.0
        %596 = vmatpush2.msra.mxu0 0.0
        %597 = vmatprep.subr.mxu0 0.0
        %598 = vmatpush2.msra.mxu0 0.0
        %599 = vmatprep.subr.mxu0 0.0
        %600 = vmatpush2.msra.mxu0 0.0
        %601 = vmatprep.mubr.f32.mxu0 0.0
        %602 = vmatmul.mubr.f32.gmra.mxu0 %v531
        %v603 = vpop.f32.mrf.mxu0
        %v604 = vadd.f32 %v527, %v603
        %v605 = vpop.f32.mrf.mxu0
        %606 = vdwg.mxu0
        %v608 = vrot.slane %v604, 1
        %v610 = vadd.f32 %v604, %v608
        %v611 = vxor.u32 %v610, 2147483648
        %v612 = vmul.f32 %v611, 1.442695
        %v613 = vpow.pop %v612
        %v614 = vadd.f32 %v613, 1.0
        %v615 = vrcp.pop %v614
        %v616 = vmul.f32 1.0, %v615
        %v617 = vlaneseq
        %v618 = vshrl.u32 %v617, 7
        %v619 = vsub.s32 0, %v618
        %v620 = vrot.slane %v616, %v619
        %622 = vbcast.lane.b32.xlu0 %v620, 256
        %v623 = vpop.permute.xlu0 %622
        %s625 = sor.u32 256, 8
        %626 = vbcast.lane.b32.xlu0 %v620, %s625
        %v627 = vpop.permute.xlu0 %626
        %s629 = sor.u32 256, 16
        %630 = vbcast.lane.b32.xlu0 %v620, %s629
        %v631 = vpop.permute.xlu0 %630
        %s633 = sor.u32 256, 24
        %634 = vbcast.lane.b32.xlu0 %v620, %s633
        %v635 = vpop.permute.xlu0 %634
        %s637 = sor.u32 256, 32
        %638 = vbcast.lane.b32.xlu0 %v620, %s637
        %v639 = vpop.permute.xlu0 %638
        %s641 = sor.u32 256, 40
        %642 = vbcast.lane.b32.xlu0 %v620, %s641
        %v643 = vpop.permute.xlu0 %642
        %s645 = sor.u32 256, 48
        %646 = vbcast.lane.b32.xlu0 %v620, %s645
        %v647 = vpop.permute.xlu0 %646
        %s649 = sor.u32 256, 56
        %650 = vbcast.lane.b32.xlu0 %v620, %s649
        %v651 = vpop.permute.xlu0 %650
        %v652 = vmul.f32 %v243, %v623
        %v653 = vmul.f32 %v244, %v623
        %v654 = vmul.f32 %v245, %v627
        %v655 = vmul.f32 %v246, %v627
        %v656 = vmul.f32 %v247, %v631
        %v657 = vmul.f32 %v248, %v631
        %v658 = vmul.f32 %v249, %v635
        %v659 = vmul.f32 %v250, %v635
        %v660 = vmul.f32 %v251, %v639
        %v661 = vmul.f32 %v252, %v639
        %v662 = vmul.f32 %v253, %v643
        %v663 = vmul.f32 %v254, %v643
        %v664 = vmul.f32 %v255, %v647
        %v665 = vmul.f32 %v256, %v647
        %v666 = vmul.f32 %v257, %v651
        %v667 = vmul.f32 %v258, %v651
        %668 = vst [vmem:[%s242] sm:$0xff] %v652
        %669 = vst [vmem:[%s242 + $0x8] sm:$0xff] %v653
        %670 = vst [vmem:[%s242 + $0x10] sm:$0xff] %v654
        %671 = vst [vmem:[%s242 + $0x18] sm:$0xff] %v655
        %672 = vst [vmem:[%s242 + $0x20] sm:$0xff] %v656
        %673 = vst [vmem:[%s242 + $0x28] sm:$0xff] %v657
        %674 = vst [vmem:[%s242 + $0x30] sm:$0xff] %v658
        %675 = vst [vmem:[%s242 + $0x38] sm:$0xff] %v659
        %676 = vst [vmem:[%s242 + $0x40] sm:$0xff] %v660
        %677 = vst [vmem:[%s242 + $0x48] sm:$0xff] %v661
        %678 = vst [vmem:[%s242 + $0x50] sm:$0xff] %v662
        %679 = vst [vmem:[%s242 + $0x58] sm:$0xff] %v663
        %680 = vst [vmem:[%s242 + $0x60] sm:$0xff] %v664
        %681 = vst [vmem:[%s242 + $0x68] sm:$0xff] %v665
        %682 = vst [vmem:[%s242 + $0x70] sm:$0xff] %v666
        %683 = vst [vmem:[%s242 + $0x78] sm:$0xff] %v667
        %s684 = sand.u32 %s140, 1
        %s685 = scalar_lea.sflag [#allocation5], %s684
        %s686 = sand.u32 %s140, 1
        %s687 = smul.addr %s686, 128
        %s688 = scalar_lea.vmem [#allocation6], %s687
        // Predicated region
        $region45: #{tpu_custom_call.1} parent=39 // pred_check
          %p689 = pneg %p150
        $region46: #{tpu_custom_call.1} parent=39 // pred_check_branch
          %691 = sbr.rel (%p689) target = $region48
        $region47: #{tpu_custom_call.1} parent=39 // pred_region
          %s693 = ssub.s32 2048, 2048
          %694 = vsyncadd %s685, %s693
          %s695 = smul.addr %s22, 16
          %s696 = smul.addr %s695, 128
          %s697 = scalar_lea.hbm %s5, %s696
          %s698 = sshll.u32 %s688, 4
          %s699 = int_to_ptr.vmem [resolvable:$true] %s698
          %704 = dma.vmem_to_hbm [thread:$0]  %s699, 2048, %s697, %s685, 256, 256, 16
        $region48: #{tpu_custom_call.1} parent=39 // pred_fallthru
          _
      $region40: #{tpu_custom_call.1} parent=5 // pred_fallthru
        _
      %p705 = scmp.le.s32.totalorder 2, %s17
      // Predicated region
      $region49: #{tpu_custom_call.1} parent=5 // pred_check
        %p706 = pneg %p705
      $region50: #{tpu_custom_call.1} parent=5 // pred_check_branch
        %708 = sbr.rel (%p706) target = $region52
      $region51: #{tpu_custom_call.1} parent=5 // pred_region
        %s709 = ssub.s32 %s17, 2
        // Predicated region
        $region53: #{tpu_custom_call.1} parent=51 // pred_check
          %p710 = pneg %p156
        $region54: #{tpu_custom_call.1} parent=51 // pred_check_branch
          %712 = sbr.rel (%p710) target = $region56
        $region55: #{tpu_custom_call.1} parent=51 // pred_region
          %s713 = sand.u32 %s141, 1
          %s714 = scalar_lea.sflag [#allocation5], %s713
          %s715 = sand.u32 %s141, 1
          %s716 = smul.addr %s715, 128
          %s717 = scalar_lea.vmem [#allocation6], %s716
          %718 = dma.done %s714, 2048
        $region56: #{tpu_custom_call.1} parent=51 // pred_fallthru
          _
      $region52: #{tpu_custom_call.1} parent=5 // pred_fallthru
        _
    $region6: #{tpu_custom_call.1} parent=1 // loop_footer
      %s21 = sadd.s32 1, %s17
    $region7: #{tpu_custom_call.1} parent=1 // loop_footer_branch
      %16 = sbr.rel target = $region3
    $region8: #{tpu_custom_call.1} parent=1 // loop_exit
      _
    %719 = vsyncpa [#allocation4], 1
    %s720 = scalar_lea.sflag [#allocation4], 1
    %721 = vsyncpa %s720, 1
    %722 = vsyncpa [#allocation5], 1
    %s723 = scalar_lea.sflag [#allocation5], 1
    %724 = vsyncpa %s723, 1

</llo_original>
